<compile_context>
chip_gen: v7x
topology: tpu7x:2x2x1
jax: 0.10.0
libtpu: 0.0.40
codegen_flags: <defaults>
</compile_context>

<pallas_src>
import jax
import jax.numpy as jnp
import numpy as np
from jax.experimental import pallas as pl
from jax.experimental.pallas import tpu as pltpu


def _round_up(x, m):
    return (x + m - 1) // m * m


def _pick_tile(n_pad):
    for t in (512, 256, 128):
        if n_pad % t == 0:
            return t
    return n_pad


def _pad2(a, rows, cols, dtype):
    r, c = a.shape
    return jnp.pad(a, ((0, rows - r), (0, cols - c))).astype(dtype)


# --------------------------------------------------------------------------
# Kernel A:  support = relu(relu(features @ W_emb + b_emb) @ W_gc1)
#   Row-tiled over N; weights stay resident (full-extent blocks).
# --------------------------------------------------------------------------
def support_kernel(feat_ref, w_emb_ref, b_emb_ref, w_gc_ref, out_ref):
    x = jnp.dot(feat_ref[...], w_emb_ref[...],
                preferred_element_type=jnp.float32)
    x = jnp.maximum(x + b_emb_ref[...], 0.0)
    s = jnp.dot(x.astype(jnp.bfloat16), w_gc_ref[...],
                preferred_element_type=jnp.float32)
    out_ref[...] = jnp.maximum(s, 0.0)


# --------------------------------------------------------------------------
# Kernel B:  hop1 = adj @ support     (first graph hop)
#   grid = (row tiles, k tiles); k is the reduction axis (arbitrary, last).
# --------------------------------------------------------------------------
def hop1_kernel(adj_ref, sup_ref, out_ref, acc_ref):
    k = pl.program_id(1)

    @pl.when(k == 0)
    def _():
        acc_ref[...] = jnp.zeros_like(acc_ref)

    acc_ref[...] += jnp.dot(adj_ref[...], sup_ref[...].astype(jnp.bfloat16),
                            preferred_element_type=jnp.float32)

    @pl.when(k == pl.num_programs(1) - 1)
    def _():
        out_ref[...] = acc_ref[...]


# --------------------------------------------------------------------------
# Kernel C:  hop2 = adj @ hop1, fused with the gating epilogue + bias.
#   With s = support >= 0, a = adj@support, a2 = adj@(adj@support):
#     out_low = a + s, out_mid = a2 - s, out_high = s - a
#     o1 = (s - a) * relu(a + a2)
#     o2 = (a2 - s) * relu(2s)      = (a2 - s) * 2s
#     o3 = (a + s) * relu(a2 - a)
#     out = relu(o1 + o2 + o3) + b_gc
# --------------------------------------------------------------------------
def hop2_gate_kernel(adj_ref, hop1_k_ref, sup_i_ref, hop1_i_ref, b_gc_ref,
                     out_ref, acc_ref):
    k = pl.program_id(1)

    @pl.when(k == 0)
    def _():
        acc_ref[...] = jnp.zeros_like(acc_ref)

    acc_ref[...] += jnp.dot(adj_ref[...], hop1_k_ref[...].astype(jnp.bfloat16),
                            preferred_element_type=jnp.float32)

    @pl.when(k == pl.num_programs(1) - 1)
    def _():
        s = sup_i_ref[...]
        a = hop1_i_ref[...]
        a2 = acc_ref[...]
        o1 = (s - a) * jnp.maximum(a + a2, 0.0)
        o2 = (a2 - s) * (2.0 * s)
        o3 = (a + s) * jnp.maximum(a2 - a, 0.0)
        out_ref[...] = jnp.maximum(o1 + o2 + o3, 0.0) + b_gc_ref[...]


# --------------------------------------------------------------------------
# Wrapper: pad to lane-dense shapes, run the 3 pallas_calls, slice padding off.
# --------------------------------------------------------------------------
def item_latent_pallas(features, adj, w_emb, b_emb, w_gc, b_gc):
    N, F = features.shape
    E = w_emb.shape[1]

    N_pad = _round_up(N, 128)
    F_pad = _round_up(F, 128)
    E_pad = _round_up(E, 128)
    tm = _pick_tile(N_pad)
    tk = _pick_tile(N_pad)

    feat_p = _pad2(features, N_pad, F_pad, jnp.bfloat16)
    adj_p = _pad2(adj, N_pad, N_pad, jnp.bfloat16)     # 0/1 -> exact in bf16
    w_emb_p = _pad2(w_emb, F_pad, E_pad, jnp.bfloat16)
    b_emb_p = _pad2(b_emb, 1, E_pad, jnp.float32)
    w_gc_p = _pad2(w_gc, E_pad, E_pad, jnp.bfloat16)
    b_gc_p = _pad2(b_gc, 1, E_pad, jnp.float32)

    n_row = N_pad // tm
    n_k = N_pad // tk

    # ---- pass A: support ----
    support = pl.pallas_call(
        support_kernel,
        out_shape=jax.ShapeDtypeStruct((N_pad, E_pad), jnp.float32),
        grid_spec=pltpu.PrefetchScalarGridSpec(
            num_scalar_prefetch=0,
            grid=(n_row,),
            in_specs=[
                pl.BlockSpec((tm, F_pad), lambda i: (i, 0)),
                pl.BlockSpec((F_pad, E_pad), lambda i: (0, 0)),
                pl.BlockSpec((1, E_pad), lambda i: (0, 0)),
                pl.BlockSpec((E_pad, E_pad), lambda i: (0, 0)),
            ],
            out_specs=pl.BlockSpec((tm, E_pad), lambda i: (i, 0)),
        ),
        compiler_params=pltpu.CompilerParams(
            dimension_semantics=("parallel",)),
        cost_estimate=pl.CostEstimate(
            flops=2 * N_pad * (F_pad + E_pad) * E_pad,
            transcendentals=0,
            bytes_accessed=2 * N_pad * F_pad + 4 * N_pad * E_pad
            + 2 * (F_pad + E_pad) * E_pad),
    )(feat_p, w_emb_p, b_emb_p, w_gc_p)

    hop_flops = 2 * N_pad * N_pad * E_pad
    hop_bytes = 2 * N_pad * N_pad + 4 * n_row * N_pad * E_pad + 4 * N_pad * E_pad

    # ---- pass B: hop1 = adj @ support ----
    hop1 = pl.pallas_call(
        hop1_kernel,
        out_shape=jax.ShapeDtypeStruct((N_pad, E_pad), jnp.float32),
        grid_spec=pltpu.PrefetchScalarGridSpec(
            num_scalar_prefetch=0,
            grid=(n_row, n_k),
            in_specs=[
                pl.BlockSpec((tm, tk), lambda i, k: (i, k)),
                pl.BlockSpec((tk, E_pad), lambda i, k: (k, 0)),
            ],
            out_specs=pl.BlockSpec((tm, E_pad), lambda i, k: (i, 0)),
            scratch_shapes=[pltpu.VMEM((tm, E_pad), jnp.float32)],
        ),
        compiler_params=pltpu.CompilerParams(
            dimension_semantics=("parallel", "arbitrary")),
        cost_estimate=pl.CostEstimate(
            flops=hop_flops, transcendentals=0, bytes_accessed=hop_bytes),
    )(adj_p, support)

    # ---- pass C: hop2 = adj @ hop1, fused gating + bias ----
    out_p = pl.pallas_call(
        hop2_gate_kernel,
        out_shape=jax.ShapeDtypeStruct((N_pad, E_pad), jnp.float32),
        grid_spec=pltpu.PrefetchScalarGridSpec(
            num_scalar_prefetch=0,
            grid=(n_row, n_k),
            in_specs=[
                pl.BlockSpec((tm, tk), lambda i, k: (i, k)),        # adj tile
                pl.BlockSpec((tk, E_pad), lambda i, k: (k, 0)),     # hop1 (matmul)
                pl.BlockSpec((tm, E_pad), lambda i, k: (i, 0)),     # support (gate)
                pl.BlockSpec((tm, E_pad), lambda i, k: (i, 0)),     # hop1 (gate)
                pl.BlockSpec((1, E_pad), lambda i, k: (0, 0)),      # bias
            ],
            out_specs=pl.BlockSpec((tm, E_pad), lambda i, k: (i, 0)),
            scratch_shapes=[pltpu.VMEM((tm, E_pad), jnp.float32)],
        ),
        compiler_params=pltpu.CompilerParams(
            dimension_semantics=("parallel", "arbitrary")),
        cost_estimate=pl.CostEstimate(
            flops=hop_flops + 10 * N_pad * E_pad,
            transcendentals=0,
            bytes_accessed=hop_bytes + 8 * n_k * N_pad * E_pad),
    )(adj_p, hop1, support, hop1, b_gc_p)

    return out_p[:N, :E]


# --------------------------------------------------------------------------
# Forward pass (mirrors READ.forward -> (loss, mrr, hr, ndcg))
# --------------------------------------------------------------------------
def read_forward(params, features, adj, train_set):
    item_latent = item_latent_pallas(
        features, adj,
        params["w_emb"], params["b_emb"], params["w_gc1"], params["b_gc1"])

    # TODO(synk): the data-dependent row gather + BPR score/loss/metrics are
    # left as XLA glue (could be fused via PrefetchScalarGridSpec + pl.Element
    # row indexing, but at B x E size it is not worth a kernel launch).
    key_emb = item_latent[train_set[:, 0]]
    pos_emb = item_latent[train_set[:, 1]]
    neg_emb = item_latent[train_set[:, 2]]

    pos_scores = jnp.sum(key_emb * pos_emb, axis=1)
    neg_scores = jnp.sum(key_emb * neg_emb, axis=1)

    # BPR loss
    loss = -jnp.mean(jnp.log(jax.nn.sigmoid(pos_scores - neg_scores) + 1e-9))

    # metrics_at_k with k=1 and scores = [pos, neg] (2 columns):
    #   pos is ranked first iff pos >= neg (stable descending sort, pos first on tie)
    pos_top = pos_scores >= neg_scores
    # target_ranks==0 replaced by 1e9 before reciprocal -> 1e-9, else rank 1 -> 1.0
    mrr = jnp.mean(jnp.where(pos_top, 1.0 / 1.0e9, 1.0))
    hr = jnp.mean(pos_top.astype(jnp.float32))
    # NDCG@1 with the (2**rel + 1)/log2 formula used in metrics_at_k:
    #   dcg = 3 if pos on top else 2; ideal_dcg = 3
    ndcg = jnp.mean(jnp.where(pos_top, 1.0, 2.0 / 3.0))
    return loss, mrr, hr, ndcg


# --------------------------------------------------------------------------
# Reference with the same numerics (bf16 MXU inputs, f32 accumulation) to
# validate the kernels.
# --------------------------------------------------------------------------
def _ref_item_latent_matched(features, adj, w_emb, b_emb, w_gc, b_gc):
    bf = lambda t: t.astype(jnp.bfloat16).astype(jnp.float32)
    x = jnp.maximum(bf(features) @ bf(w_emb) + b_emb, 0.0)
    s = jnp.maximum(bf(x) @ bf(w_gc), 0.0)
    a = bf(adj) @ bf(s)
    a2 = bf(adj) @ bf(a)
    o1 = (s - a) * jnp.maximum(a + a2, 0.0)
    o2 = (a2 - s) * (2.0 * s)
    o3 = (a + s) * jnp.maximum(a2 - a, 0.0)
    return jnp.maximum(o1 + o2 + o3, 0.0) + b_gc


if __name__ == "__main__":
    N = 32          # number of graph nodes
    F = 16          # feature_size
    E = 32          # embedding_size
    B = 8           # number of (key, pos, neg) training triples

    key = jax.random.PRNGKey(0)
    k_feat, k_adj, k_ts, k_we, k_be, k_wg, k_bg = jax.random.split(key, 7)

    features = jax.random.normal(k_feat, (N, F), dtype=jnp.float32)
    adj = (jax.random.uniform(k_adj, (N, N)) < 0.2).astype(jnp.float32)
    train_set = jax.random.randint(k_ts, (B, 3), 0, N, dtype=jnp.int32)

    # deterministic synthetic parameter init (mimicking uniform(-stdv, stdv))
    stdv = 1.0 / np.sqrt(E)
    params = {
        "w_emb": jax.random.uniform(k_we, (F, E), jnp.float32, -stdv, stdv),
        "b_emb": jax.random.uniform(k_be, (1, E), jnp.float32, -stdv, stdv),
        "w_gc1": jax.random.uniform(k_wg, (E, E), jnp.float32, -stdv, stdv),
        "b_gc1": jax.random.uniform(k_bg, (1, E), jnp.float32, -stdv, stdv),
    }

    loss, mrr, hr, ndcg = read_forward(params, features, adj, train_set)
    jax.block_until_ready((loss, mrr, hr, ndcg))

    # sanity check: kernel pipeline vs matched-precision JAX reference
    lat_kernel = item_latent_pallas(features, adj, params["w_emb"],
                                    params["b_emb"], params["w_gc1"],
                                    params["b_gc1"])
    lat_ref = _ref_item_latent_matched(features, adj, params["w_emb"],
                                       params["b_emb"], params["w_gc1"],
                                       params["b_gc1"])
    np.testing.assert_allclose(np.asarray(lat_kernel), np.asarray(lat_ref),
                               rtol=1e-4, atol=1e-4)

    print("KERNEL_OK")
</pallas_src>

<mosaic_0001>
module attributes {stable_mosaic.version = 11 : i64} {
  func.func @support_kernel(%arg0: i32, %arg1: memref<128x128xbf16, #tpu.memory_space<vmem>>, %arg2: memref<128x128xbf16, #tpu.memory_space<vmem>>, %arg3: memref<1x128xf32, #tpu.memory_space<vmem>>, %arg4: memref<128x128xbf16, #tpu.memory_space<vmem>>, %arg5: memref<128x128xf32, #tpu.memory_space<vmem>>) attributes {dimension_semantics = [#tpu.dimension_semantics<parallel>], iteration_bounds = array<i64: 1>, scalar_prefetch = 0 : i64, scratch_operands = 0 : i64, tpu.core_type = #tpu.core_type<tc>, window_params = [{transform_indices = @transform_0, window_bounds = array<i64: 128, 128>}, {pipeline_mode = #tpu.pipeline_mode<synchronous>, transform_indices = @transform_1, window_bounds = array<i64: 128, 128>}, {pipeline_mode = #tpu.pipeline_mode<synchronous>, transform_indices = @transform_2, window_bounds = array<i64: 1, 128>}, {pipeline_mode = #tpu.pipeline_mode<synchronous>, transform_indices = @transform_3, window_bounds = array<i64: 128, 128>}, {transform_indices = @transform_4, window_bounds = array<i64: 128, 128>}]} {
    %c0 = arith.constant 0 : index
    %c0_0 = arith.constant 0 : index
    %0 = vector.load %arg1[%c0, %c0_0] : memref<128x128xbf16, #tpu.memory_space<vmem>>, vector<128x128xbf16>
    %c0_1 = arith.constant 0 : index
    %c0_2 = arith.constant 0 : index
    %1 = vector.load %arg2[%c0_1, %c0_2] : memref<128x128xbf16, #tpu.memory_space<vmem>>, vector<128x128xbf16>
    %cst = arith.constant dense<0.000000e+00> : vector<128x128xf32>
    %2 = tpu.matmul %0, %1, %cst {dimension_numbers = #tpu.dot_dimension_numbers<[1], [0], [0], [1], [0, 0, 1, 1], [], []>} : vector<128x128xbf16>, vector<128x128xbf16>, vector<128x128xf32> -> vector<128x128xf32>
    %c0_3 = arith.constant 0 : index
    %c0_4 = arith.constant 0 : index
    %3 = vector.load %arg3[%c0_3, %c0_4] : memref<1x128xf32, #tpu.memory_space<vmem>>, vector<1x128xf32>
    %4 = vector.broadcast %3 : vector<1x128xf32> to vector<128x128xf32>
    %5 = arith.addf %2, %4 : vector<128x128xf32>
    %cst_5 = arith.constant 0.000000e+00 : f32
    %6 = vector.broadcast %cst_5 : f32 to vector<128x128xf32>
    %7 = arith.maximumf %5, %6 : vector<128x128xf32>
    %8 = arith.truncf %7 : vector<128x128xf32> to vector<128x128xbf16>
    %c0_6 = arith.constant 0 : index
    %c0_7 = arith.constant 0 : index
    %9 = vector.load %arg4[%c0_6, %c0_7] : memref<128x128xbf16, #tpu.memory_space<vmem>>, vector<128x128xbf16>
    %cst_8 = arith.constant dense<0.000000e+00> : vector<128x128xf32>
    %10 = tpu.matmul %8, %9, %cst_8 {dimension_numbers = #tpu.dot_dimension_numbers<[1], [0], [0], [1], [0, 0, 1, 1], [], []>} : vector<128x128xbf16>, vector<128x128xbf16>, vector<128x128xf32> -> vector<128x128xf32>
    %cst_9 = arith.constant 0.000000e+00 : f32
    %11 = vector.broadcast %cst_9 : f32 to vector<128x128xf32>
    %12 = arith.maximumf %10, %11 : vector<128x128xf32>
    %c0_10 = arith.constant 0 : index
    %c0_11 = arith.constant 0 : index
    %13 = vector.load %arg5[%c0_10, %c0_11] : memref<128x128xf32, #tpu.memory_space<vmem>>, vector<128x128xf32>
    tpu.vector_store %arg5[%c0_10, %c0_11], %12 {strides = array<i32>} : memref<128x128xf32, #tpu.memory_space<vmem>>, vector<128x128xf32>,
    return
  }
  func.func @transform_0(%arg0: i32) -> (i32, i32) {
    %c0_i32 = arith.constant 0 : i32
    %c0_i32_0 = arith.constant 0 : i32
    return %arg0, %c0_i32 : i32, i32
  }
  func.func @transform_1(%arg0: i32) -> (i32, i32) {
    %c0_i32 = arith.constant 0 : i32
    %c0_i32_0 = arith.constant 0 : i32
    %c0_i32_1 = arith.constant 0 : i32
    return %c0_i32, %c0_i32_0 : i32, i32
  }
  func.func @transform_2(%arg0: i32) -> (i32, i32) {
    %c0_i32 = arith.constant 0 : i32
    %c0_i32_0 = arith.constant 0 : i32
    %c0_i32_1 = arith.constant 0 : i32
    return %c0_i32, %c0_i32_0 : i32, i32
  }
  func.func @transform_3(%arg0: i32) -> (i32, i32) {
    %c0_i32 = arith.constant 0 : i32
    %c0_i32_0 = arith.constant 0 : i32
    %c0_i32_1 = arith.constant 0 : i32
    return %c0_i32, %c0_i32_0 : i32, i32
  }
  func.func @transform_4(%arg0: i32) -> (i32, i32) {
    %c0_i32 = arith.constant 0 : i32
    %c0_i32_0 = arith.constant 0 : i32
    return %arg0, %c0_i32 : i32, i32
  }
}

</mosaic_0001>

<llo_original>
// kernel: tpu_custom_call.1
$region0: #{tpu_custom_call.1}
  #allocation0 [shape = 'u32[]', space=smem, size = 0x4, offset = 0x4, fixed_abs, tag = 'smem constant byte address 0x4 - core index']
  #allocation1 [shape = 'u32[144,128]{1,0:T(1,128)}', space=vmem, size = 0x12000, scoped, tag = 'internal scratch']
  %s0 = inlined_call_operand.hbm [shape: bf16[128,128], index: 0, kind: input, shape index: {}]
  %s1 = inlined_call_operand.hbm [shape: bf16[128,128], index: 1, kind: input, shape index: {}]
  %s2 = inlined_call_operand.vmem [shape: f32[1,128], index: 2, kind: input, shape index: {}]
  %s3 = inlined_call_operand.hbm [shape: bf16[128,128], index: 3, kind: input, shape index: {}]
  %s4 = inlined_call_operand.hbm [shape: f32[128,128], index: 4, kind: output, shape index: {}]
  %s5 = sld [smem:[#allocation0]]
  $region38: #{tpu_custom_call.1} parent=0
    _
  %s7 = ssub.s32 1, %s5
  %s8 = scalar_select 0, %s7, %s5
  $region1: #{tpu_custom_call.1} parent=0
    #allocation2 [shape = 'u8[32768]{0}', space=vmem, size = 0x8000, scoped, tag = 'input window, operand 0, single buffered']
    #allocation3 [shape = 's32[1]{0}', space=sflag, size = 0x4, scoped, tag = 'scoped memory for tpu_custom_call.1']
    #allocation4 [shape = 's32[1]{0}', space=sflag, size = 0x4, scoped, tag = 'scoped memory for tpu_custom_call.1']
    #allocation5 [shape = 'u8[32768]{0}', space=vmem, size = 0x8000, scoped, tag = 'input window, operand 1, single buffered']
    #allocation6 [shape = 's32[1]{0}', space=sflag, size = 0x4, scoped, tag = 'scoped memory for tpu_custom_call.1']
    #allocation7 [shape = 'u8[32768]{0}', space=vmem, size = 0x8000, scoped, tag = 'input window, operand 3, single buffered']
    #allocation8 [shape = 'u8[65536]{0}', space=vmem, size = 0x10000, scoped, tag = 'output window, operand 0, single buffered']
    %9 = vsyncpa [#allocation3], 0
    %10 = vsyncpa [#allocation6], 0
    %11 = vsyncpa [#allocation4], 0
    // Predicated region
    $region2: #{tpu_custom_call.1} parent=1 // pred_check
      _
    $region3: #{tpu_custom_call.1} parent=1 // pred_check_branch
      %13 = sbr.rel (0) target = $region5
    $region4: #{tpu_custom_call.1} parent=1 // pred_region
      %s15 = ssub.s32 1024, 1024
      %16 = vsyncadd [#allocation3], %s15
      %s17 = sshll.u32 [#allocation2], 4
      %s18 = int_to_ptr.vmem [resolvable:$true] %s17
      %23 = dma.hbm_to_vmem [thread:$0]  %s0, 1024, %s18, [#allocation3], 64, 64, 4
    $region5: #{tpu_custom_call.1} parent=1 // pred_fallthru
      _
    // Predicated region
    $region6: #{tpu_custom_call.1} parent=1 // pred_check
      _
    $region7: #{tpu_custom_call.1} parent=1 // pred_check_branch
      %25 = sbr.rel (0) target = $region9
    $region8: #{tpu_custom_call.1} parent=1 // pred_region
      %s27 = ssub.s32 1024, 1024
      %28 = vsyncadd [#allocation6], %s27
      %s29 = sshll.u32 [#allocation5], 4
      %s30 = int_to_ptr.vmem [resolvable:$true] %s29
      %35 = dma.hbm_to_vmem [thread:$0]  %s1, 1024, %s30, [#allocation6], 64, 64, 4
    $region9: #{tpu_custom_call.1} parent=1 // pred_fallthru
      _
    // Predicated region
    $region10: #{tpu_custom_call.1} parent=1 // pred_check
      _
    $region11: #{tpu_custom_call.1} parent=1 // pred_check_branch
      %37 = sbr.rel (0) target = $region13
    $region12: #{tpu_custom_call.1} parent=1 // pred_region
      _
    $region13: #{tpu_custom_call.1} parent=1 // pred_fallthru
      _
    // Predicated region
    $region14: #{tpu_custom_call.1} parent=1 // pred_check
      _
    $region15: #{tpu_custom_call.1} parent=1 // pred_check_branch
      %39 = sbr.rel (0) target = $region17
    $region16: #{tpu_custom_call.1} parent=1 // pred_region
      %s41 = ssub.s32 1024, 1024
      %42 = vsyncadd [#allocation6], %s41
      %s43 = sshll.u32 [#allocation7], 4
      %s44 = int_to_ptr.vmem [resolvable:$true] %s43
      %49 = dma.hbm_to_vmem [thread:$0]  %s3, 1024, %s44, [#allocation6], 64, 64, 4
    $region17: #{tpu_custom_call.1} parent=1 // pred_fallthru
      _
    // Predicated region
    $region18: #{tpu_custom_call.1} parent=1 // pred_check
      _
    $region19: #{tpu_custom_call.1} parent=1 // pred_check_branch
      %51 = sbr.rel (0) target = $region21
    $region20: #{tpu_custom_call.1} parent=1 // pred_region
      %52 = dma.done [#allocation3], 1024
    $region21: #{tpu_custom_call.1} parent=1 // pred_fallthru
      _
    // Predicated region
    $region22: #{tpu_custom_call.1} parent=1 // pred_check
      _
    $region23: #{tpu_custom_call.1} parent=1 // pred_check_branch
      %54 = sbr.rel (0) target = $region25
    $region24: #{tpu_custom_call.1} parent=1 // pred_region
      %55 = dma.done [#allocation6], 1024
    $region25: #{tpu_custom_call.1} parent=1 // pred_fallthru
      _
    // Predicated region
    $region26: #{tpu_custom_call.1} parent=1 // pred_check
      _
    $region27: #{tpu_custom_call.1} parent=1 // pred_check_branch
      %57 = sbr.rel (0) target = $region29
    $region28: #{tpu_custom_call.1} parent=1 // pred_region
      %58 = dma.done [#allocation6], 1024
    $region29: #{tpu_custom_call.1} parent=1 // pred_fallthru
      _
    %v60 = vld [vmem:[#allocation2] sm:$0xf]
    %v61 = vld [vmem:[#allocation2 + $0x4] sm:$0xf]
    %v62 = vld [vmem:[#allocation2 + $0x8] sm:$0xf]
    %v63 = vld [vmem:[#allocation2 + $0xc] sm:$0xf]
    %v64 = vld [vmem:[#allocation2 + $0x10] sm:$0xf]
    %v65 = vld [vmem:[#allocation2 + $0x14] sm:$0xf]
    %v66 = vld [vmem:[#allocation2 + $0x18] sm:$0xf]
    %v67 = vld [vmem:[#allocation2 + $0x1c] sm:$0xf]
    %v68 = vld [vmem:[#allocation2 + $0x20] sm:$0xf]
    %v69 = vld [vmem:[#allocation2 + $0x24] sm:$0xf]
    %v70 = vld [vmem:[#allocation2 + $0x28] sm:$0xf]
    %v71 = vld [vmem:[#allocation2 + $0x2c] sm:$0xf]
    %v72 = vld [vmem:[#allocation2 + $0x30] sm:$0xf]
    %v73 = vld [vmem:[#allocation2 + $0x34] sm:$0xf]
    %v74 = vld [vmem:[#allocation2 + $0x38] sm:$0xf]
    %v75 = vld [vmem:[#allocation2 + $0x3c] sm:$0xf]
    %v76 = vld [vmem:[#allocation5] sm:$0xf]
    %v77 = vld [vmem:[#allocation5 + $0x4] sm:$0xf]
    %v78 = vld [vmem:[#allocation5 + $0x8] sm:$0xf]
    %v79 = vld [vmem:[#allocation5 + $0xc] sm:$0xf]
    %v80 = vld [vmem:[#allocation5 + $0x10] sm:$0xf]
    %v81 = vld [vmem:[#allocation5 + $0x14] sm:$0xf]
    %v82 = vld [vmem:[#allocation5 + $0x18] sm:$0xf]
    %v83 = vld [vmem:[#allocation5 + $0x1c] sm:$0xf]
    %v84 = vld [vmem:[#allocation5 + $0x20] sm:$0xf]
    %v85 = vld [vmem:[#allocation5 + $0x24] sm:$0xf]
    %v86 = vld [vmem:[#allocation5 + $0x28] sm:$0xf]
    %v87 = vld [vmem:[#allocation5 + $0x2c] sm:$0xf]
    %v88 = vld [vmem:[#allocation5 + $0x30] sm:$0xf]
    %v89 = vld [vmem:[#allocation5 + $0x34] sm:$0xf]
    %v90 = vld [vmem:[#allocation5 + $0x38] sm:$0xf]
    %v91 = vld [vmem:[#allocation5 + $0x3c] sm:$0xf]
    %v92 = vld [vmem:[%s2] sm:$0x1]
    %v94 = vlaneseq
    %v95 = vshrl.u32 %v94, 7
    %v96 = vsub.s32 0, %v95
    %v97 = vrot.slane %v92, %v96
    %v115 = vunpack.c.l.b16 %v60
    %v116 = vunpack.c.l.b16 %v61
    %v117 = vunpack.c.l.b16 %v62
    %v118 = vunpack.c.l.b16 %v63
    %v119 = vunpack.c.l.b16 %v64
    %v120 = vunpack.c.l.b16 %v65
    %v121 = vunpack.c.l.b16 %v66
    %v122 = vunpack.c.l.b16 %v67
    %v123 = vunpack.c.l.b16 %v68
    %v124 = vunpack.c.l.b16 %v69
    %v125 = vunpack.c.l.b16 %v70
    %v126 = vunpack.c.l.b16 %v71
    %v127 = vunpack.c.l.b16 %v72
    %v128 = vunpack.c.l.b16 %v73
    %v129 = vunpack.c.l.b16 %v74
    %v130 = vunpack.c.l.b16 %v75
    %v131 = vpack.c.b16 %v116, %v115
    %v132 = vpack.c.b16 %v118, %v117
    %v133 = vpack.c.b16 %v120, %v119
    %v134 = vpack.c.b16 %v122, %v121
    %v135 = vpack.c.b16 %v124, %v123
    %v136 = vpack.c.b16 %v126, %v125
    %v137 = vpack.c.b16 %v128, %v127
    %v138 = vpack.c.b16 %v130, %v129
    %v163 = vunpack.c.l.b16 %v76
    %v164 = vunpack.c.l.b16 %v77
    %v165 = vunpack.c.l.b16 %v78
    %v166 = vunpack.c.l.b16 %v79
    %v167 = vunpack.c.l.b16 %v80
    %v168 = vunpack.c.l.b16 %v81
    %v169 = vunpack.c.l.b16 %v82
    %v170 = vunpack.c.l.b16 %v83
    %v171 = vunpack.c.l.b16 %v84
    %v172 = vunpack.c.l.b16 %v85
    %v173 = vunpack.c.l.b16 %v86
    %v174 = vunpack.c.l.b16 %v87
    %v175 = vunpack.c.l.b16 %v88
    %v176 = vunpack.c.l.b16 %v89
    %v177 = vunpack.c.l.b16 %v90
    %v178 = vunpack.c.l.b16 %v91
    %v179 = vpack.c.b16 %v164, %v163
    %v180 = vpack.c.b16 %v166, %v165
    %v181 = vpack.c.b16 %v168, %v167
    %v182 = vpack.c.b16 %v170, %v169
    %v183 = vpack.c.b16 %v172, %v171
    %v184 = vpack.c.b16 %v174, %v173
    %v185 = vpack.c.b16 %v176, %v175
    %v186 = vpack.c.b16 %v178, %v177
    %195 = vmatprep.subr.bf16.mxu0 0
    %196 = vmatpush1.bf16.msra.mxu0 %v179
    %197 = vmatprep.subr.bf16.mxu0 0
    %198 = vmatpush1.bf16.msra.mxu0 %v180
    %199 = vmatprep.subr.bf16.mxu0 0
    %200 = vmatpush1.bf16.msra.mxu0 %v181
    %201 = vmatprep.subr.bf16.mxu0 0
    %202 = vmatpush1.bf16.msra.mxu0 %v182
    %203 = vmatprep.subr.bf16.mxu0 0
    %204 = vmatpush1.bf16.msra.mxu0 %v183
    %205 = vmatprep.subr.bf16.mxu0 0
    %206 = vmatpush1.bf16.msra.mxu0 %v184
    %207 = vmatprep.subr.bf16.mxu0 0
    %208 = vmatpush1.bf16.msra.mxu0 %v185
    %209 = vmatprep.subr.bf16.mxu0 0
    %210 = vmatpush1.bf16.msra.mxu0 %v186
    %211 = vmatprep.subr.bf16.mxu0 0
    %212 = vmatpush1.bf16.msra.mxu0 0
    %213 = vmatprep.subr.bf16.mxu0 0
    %214 = vmatpush1.bf16.msra.mxu0 0
    %215 = vmatprep.subr.bf16.mxu0 0
    %216 = vmatpush1.bf16.msra.mxu0 0
    %217 = vmatprep.subr.bf16.mxu0 0
    %218 = vmatpush1.bf16.msra.mxu0 0
    %219 = vmatprep.subr.bf16.mxu0 0
    %220 = vmatpush1.bf16.msra.mxu0 0
    %221 = vmatprep.subr.bf16.mxu0 0
    %222 = vmatpush1.bf16.msra.mxu0 0
    %223 = vmatprep.subr.bf16.mxu0 0
    %224 = vmatpush1.bf16.msra.mxu0 0
    %225 = vmatprep.subr.bf16.mxu0 0
    %226 = vmatpush1.bf16.msra.mxu0 0
    %227 = vmatprep.mubr.bf16.mxu0 0
    %228 = vmatmul.mubr.bf16.gmra.mrb[0].mxu0 %v131
    %v229 = vpop.f32.mrb[0].mxu0
    %v230 = vadd.f32 %v97, %v229
    %v231 = vpop.f32.mrb[0].mxu0
    %v232 = vpop.f32.mrb[0].mxu0
    %v233 = vadd.f32 %v97, %v232
    %v234 = vpop.f32.mrb[0].mxu0
    %235 = vmatprep.mubr.bf16.mxu0 0
    %236 = vmatmul.mubr.bf16.gmra.mrb[0].mxu0 %v132
    %v237 = vpop.f32.mrb[0].mxu0
    %v238 = vadd.f32 %v97, %v237
    %v239 = vpop.f32.mrb[0].mxu0
    %v240 = vpop.f32.mrb[0].mxu0
    %v241 = vadd.f32 %v97, %v240
    %v242 = vpop.f32.mrb[0].mxu0
    %243 = vmatprep.mubr.bf16.mxu0 0
    %244 = vmatmul.mubr.bf16.gmra.mrb[0].mxu0 %v133
    %v245 = vpop.f32.mrb[0].mxu0
    %v246 = vadd.f32 %v97, %v245
    %v247 = vpop.f32.mrb[0].mxu0
    %v248 = vpop.f32.mrb[0].mxu0
    %v249 = vadd.f32 %v97, %v248
    %v250 = vpop.f32.mrb[0].mxu0
    %251 = vmatprep.mubr.bf16.mxu0 0
    %252 = vmatmul.mubr.bf16.gmra.mrb[0].mxu0 %v134
    %v253 = vpop.f32.mrb[0].mxu0
    %v254 = vadd.f32 %v97, %v253
    %v255 = vpop.f32.mrb[0].mxu0
    %v256 = vpop.f32.mrb[0].mxu0
    %v257 = vadd.f32 %v97, %v256
    %v258 = vpop.f32.mrb[0].mxu0
    %259 = vmatprep.mubr.bf16.mxu0 0
    %260 = vmatmul.mubr.bf16.gmra.mrb[0].mxu0 %v135
    %v261 = vpop.f32.mrb[0].mxu0
    %v262 = vadd.f32 %v97, %v261
    %v263 = vpop.f32.mrb[0].mxu0
    %v264 = vpop.f32.mrb[0].mxu0
    %v265 = vadd.f32 %v97, %v264
    %v266 = vpop.f32.mrb[0].mxu0
    %267 = vmatprep.mubr.bf16.mxu0 0
    %268 = vmatmul.mubr.bf16.gmra.mrb[0].mxu0 %v136
    %v269 = vpop.f32.mrb[0].mxu0
    %v270 = vadd.f32 %v97, %v269
    %v271 = vpop.f32.mrb[0].mxu0
    %v272 = vpop.f32.mrb[0].mxu0
    %v273 = vadd.f32 %v97, %v272
    %v274 = vpop.f32.mrb[0].mxu0
    %275 = vmatprep.mubr.bf16.mxu0 0
    %276 = vmatmul.mubr.bf16.gmra.mrb[0].mxu0 %v137
    %v277 = vpop.f32.mrb[0].mxu0
    %v278 = vadd.f32 %v97, %v277
    %v279 = vpop.f32.mrb[0].mxu0
    %v280 = vpop.f32.mrb[0].mxu0
    %v281 = vadd.f32 %v97, %v280
    %v282 = vpop.f32.mrb[0].mxu0
    %283 = vmatprep.mubr.bf16.mxu0 0
    %284 = vmatmul.mubr.bf16.gmra.mrb[0].mxu0 %v138
    %v285 = vpop.f32.mrb[0].mxu0
    %v286 = vadd.f32 %v97, %v285
    %v287 = vpop.f32.mrb[0].mxu0
    %v288 = vpop.f32.mrb[0].mxu0
    %v289 = vadd.f32 %v97, %v288
    %v290 = vpop.f32.mrb[0].mxu0
    %291 = vdwg.mxu0
    %v292 = vmax.f32 %v230, 0.0
    %v293 = vmax.f32 %v233, 0.0
    %v294 = vmax.f32 %v238, 0.0
    %v295 = vmax.f32 %v241, 0.0
    %v296 = vmax.f32 %v246, 0.0
    %v297 = vmax.f32 %v249, 0.0
    %v298 = vmax.f32 %v254, 0.0
    %v299 = vmax.f32 %v257, 0.0
    %v300 = vmax.f32 %v262, 0.0
    %v301 = vmax.f32 %v265, 0.0
    %v302 = vmax.f32 %v270, 0.0
    %v303 = vmax.f32 %v273, 0.0
    %v304 = vmax.f32 %v278, 0.0
    %v305 = vmax.f32 %v281, 0.0
    %v306 = vmax.f32 %v286, 0.0
    %v307 = vmax.f32 %v289, 0.0
    %v308 = vpack.c.bf16 %v293, %v292
    %v309 = vpack.c.bf16 %v295, %v294
    %v310 = vpack.c.bf16 %v297, %v296
    %v311 = vpack.c.bf16 %v299, %v298
    %v312 = vpack.c.bf16 %v301, %v300
    %v313 = vpack.c.bf16 %v303, %v302
    %v314 = vpack.c.bf16 %v305, %v304
    %v315 = vpack.c.bf16 %v307, %v306
    %v316 = vld [vmem:[#allocation7] sm:$0xf]
    %v317 = vld [vmem:[#allocation7 + $0x4] sm:$0xf]
    %v318 = vld [vmem:[#allocation7 + $0x8] sm:$0xf]
    %v319 = vld [vmem:[#allocation7 + $0xc] sm:$0xf]
    %v320 = vld [vmem:[#allocation7 + $0x10] sm:$0xf]
    %v321 = vld [vmem:[#allocation7 + $0x14] sm:$0xf]
    %v322 = vld [vmem:[#allocation7 + $0x18] sm:$0xf]
    %v323 = vld [vmem:[#allocation7 + $0x1c] sm:$0xf]
    %v324 = vld [vmem:[#allocation7 + $0x20] sm:$0xf]
    %v325 = vld [vmem:[#allocation7 + $0x24] sm:$0xf]
    %v326 = vld [vmem:[#allocation7 + $0x28] sm:$0xf]
    %v327 = vld [vmem:[#allocation7 + $0x2c] sm:$0xf]
    %v328 = vld [vmem:[#allocation7 + $0x30] sm:$0xf]
    %v329 = vld [vmem:[#allocation7 + $0x34] sm:$0xf]
    %v330 = vld [vmem:[#allocation7 + $0x38] sm:$0xf]
    %v331 = vld [vmem:[#allocation7 + $0x3c] sm:$0xf]
    %v348 = vunpack.c.l.b16 %v316
    %v349 = vunpack.c.l.b16 %v317
    %v350 = vunpack.c.l.b16 %v318
    %v351 = vunpack.c.l.b16 %v319
    %v352 = vunpack.c.l.b16 %v320
    %v353 = vunpack.c.l.b16 %v321
    %v354 = vunpack.c.l.b16 %v322
    %v355 = vunpack.c.l.b16 %v323
    %v356 = vunpack.c.l.b16 %v324
    %v357 = vunpack.c.l.b16 %v325
    %v358 = vunpack.c.l.b16 %v326
    %v359 = vunpack.c.l.b16 %v327
    %v360 = vunpack.c.l.b16 %v328
    %v361 = vunpack.c.l.b16 %v329
    %v362 = vunpack.c.l.b16 %v330
    %v363 = vunpack.c.l.b16 %v331
    %v364 = vpack.c.b16 %v349, %v348
    %v365 = vpack.c.b16 %v351, %v350
    %v366 = vpack.c.b16 %v353, %v352
    %v367 = vpack.c.b16 %v355, %v354
    %v368 = vpack.c.b16 %v357, %v356
    %v369 = vpack.c.b16 %v359, %v358
    %v370 = vpack.c.b16 %v361, %v360
    %v371 = vpack.c.b16 %v363, %v362
    %380 = vmatprep.subr.bf16.mxu0 0
    %381 = vmatpush1.bf16.msra.mxu0 %v364
    %382 = vmatprep.subr.bf16.mxu0 0
    %383 = vmatpush1.bf16.msra.mxu0 %v365
    %384 = vmatprep.subr.bf16.mxu0 0
    %385 = vmatpush1.bf16.msra.mxu0 %v366
    %386 = vmatprep.subr.bf16.mxu0 0
    %387 = vmatpush1.bf16.msra.mxu0 %v367
    %388 = vmatprep.subr.bf16.mxu0 0
    %389 = vmatpush1.bf16.msra.mxu0 %v368
    %390 = vmatprep.subr.bf16.mxu0 0
    %391 = vmatpush1.bf16.msra.mxu0 %v369
    %392 = vmatprep.subr.bf16.mxu0 0
    %393 = vmatpush1.bf16.msra.mxu0 %v370
    %394 = vmatprep.subr.bf16.mxu0 0
    %395 = vmatpush1.bf16.msra.mxu0 %v371
    %396 = vmatprep.subr.bf16.mxu0 0
    %397 = vmatpush1.bf16.msra.mxu0 0
    %398 = vmatprep.subr.bf16.mxu0 0
    %399 = vmatpush1.bf16.msra.mxu0 0
    %400 = vmatprep.subr.bf16.mxu0 0
    %401 = vmatpush1.bf16.msra.mxu0 0
    %402 = vmatprep.subr.bf16.mxu0 0
    %403 = vmatpush1.bf16.msra.mxu0 0
    %404 = vmatprep.subr.bf16.mxu0 0
    %405 = vmatpush1.bf16.msra.mxu0 0
    %406 = vmatprep.subr.bf16.mxu0 0
    %407 = vmatpush1.bf16.msra.mxu0 0
    %408 = vmatprep.subr.bf16.mxu0 0
    %409 = vmatpush1.bf16.msra.mxu0 0
    %410 = vmatprep.subr.bf16.mxu0 0
    %411 = vmatpush1.bf16.msra.mxu0 0
    %412 = vmatprep.mubr.bf16.mxu0 0
    %413 = vmatmul.mubr.bf16.gmra.mrb[0].mxu0 %v308
    %v414 = vpop.f32.mrb[0].mxu0
    %v415 = vadd.f32 0.0, %v414
    %v416 = vpop.f32.mrb[0].mxu0
    %v417 = vpop.f32.mrb[0].mxu0
    %v418 = vadd.f32 0.0, %v417
    %v419 = vpop.f32.mrb[0].mxu0
    %420 = vmatprep.mubr.bf16.mxu0 0
    %421 = vmatmul.mubr.bf16.gmra.mrb[0].mxu0 %v309
    %v422 = vpop.f32.mrb[0].mxu0
    %v423 = vadd.f32 0.0, %v422
    %v424 = vpop.f32.mrb[0].mxu0
    %v425 = vpop.f32.mrb[0].mxu0
    %v426 = vadd.f32 0.0, %v425
    %v427 = vpop.f32.mrb[0].mxu0
    %428 = vmatprep.mubr.bf16.mxu0 0
    %429 = vmatmul.mubr.bf16.gmra.mrb[0].mxu0 %v310
    %v430 = vpop.f32.mrb[0].mxu0
    %v431 = vadd.f32 0.0, %v430
    %v432 = vpop.f32.mrb[0].mxu0
    %v433 = vpop.f32.mrb[0].mxu0
    %v434 = vadd.f32 0.0, %v433
    %v435 = vpop.f32.mrb[0].mxu0
    %436 = vmatprep.mubr.bf16.mxu0 0
    %437 = vmatmul.mubr.bf16.gmra.mrb[0].mxu0 %v311
    %v438 = vpop.f32.mrb[0].mxu0
    %v439 = vadd.f32 0.0, %v438
    %v440 = vpop.f32.mrb[0].mxu0
    %v441 = vpop.f32.mrb[0].mxu0
    %v442 = vadd.f32 0.0, %v441
    %v443 = vpop.f32.mrb[0].mxu0
    %444 = vmatprep.mubr.bf16.mxu0 0
    %445 = vmatmul.mubr.bf16.gmra.mrb[0].mxu0 %v312
    %v446 = vpop.f32.mrb[0].mxu0
    %v447 = vadd.f32 0.0, %v446
    %v448 = vpop.f32.mrb[0].mxu0
    %v449 = vpop.f32.mrb[0].mxu0
    %v450 = vadd.f32 0.0, %v449
    %v451 = vpop.f32.mrb[0].mxu0
    %452 = vmatprep.mubr.bf16.mxu0 0
    %453 = vmatmul.mubr.bf16.gmra.mrb[0].mxu0 %v313
    %v454 = vpop.f32.mrb[0].mxu0
    %v455 = vadd.f32 0.0, %v454
    %v456 = vpop.f32.mrb[0].mxu0
    %v457 = vpop.f32.mrb[0].mxu0
    %v458 = vadd.f32 0.0, %v457
    %v459 = vpop.f32.mrb[0].mxu0
    %460 = vmatprep.mubr.bf16.mxu0 0
    %461 = vmatmul.mubr.bf16.gmra.mrb[0].mxu0 %v314
    %v462 = vpop.f32.mrb[0].mxu0
    %v463 = vadd.f32 0.0, %v462
    %v464 = vpop.f32.mrb[0].mxu0
    %v465 = vpop.f32.mrb[0].mxu0
    %v466 = vadd.f32 0.0, %v465
    %v467 = vpop.f32.mrb[0].mxu0
    %468 = vmatprep.mubr.bf16.mxu0 0
    %469 = vmatmul.mubr.bf16.gmra.mrb[0].mxu0 %v315
    %v470 = vpop.f32.mrb[0].mxu0
    %v471 = vadd.f32 0.0, %v470
    %v472 = vpop.f32.mrb[0].mxu0
    %v473 = vpop.f32.mrb[0].mxu0
    %v474 = vadd.f32 0.0, %v473
    %v475 = vpop.f32.mrb[0].mxu0
    %476 = vdwg.mxu0
    %v477 = vmax.f32 %v415, 0.0
    %v478 = vmax.f32 %v418, 0.0
    %v479 = vmax.f32 %v423, 0.0
    %v480 = vmax.f32 %v426, 0.0
    %v481 = vmax.f32 %v431, 0.0
    %v482 = vmax.f32 %v434, 0.0
    %v483 = vmax.f32 %v439, 0.0
    %v484 = vmax.f32 %v442, 0.0
    %v485 = vmax.f32 %v447, 0.0
    %v486 = vmax.f32 %v450, 0.0
    %v487 = vmax.f32 %v455, 0.0
    %v488 = vmax.f32 %v458, 0.0
    %v489 = vmax.f32 %v463, 0.0
    %v490 = vmax.f32 %v466, 0.0
    %v491 = vmax.f32 %v471, 0.0
    %v492 = vmax.f32 %v474, 0.0
    %493 = vst [vmem:[#allocation8] sm:$0xff] %v477
    %494 = vst [vmem:[#allocation8 + $0x8] sm:$0xff] %v478
    %495 = vst [vmem:[#allocation8 + $0x10] sm:$0xff] %v479
    %496 = vst [vmem:[#allocation8 + $0x18] sm:$0xff] %v480
    %497 = vst [vmem:[#allocation8 + $0x20] sm:$0xff] %v481
    %498 = vst [vmem:[#allocation8 + $0x28] sm:$0xff] %v482
    %499 = vst [vmem:[#allocation8 + $0x30] sm:$0xff] %v483
    %500 = vst [vmem:[#allocation8 + $0x38] sm:$0xff] %v484
    %501 = vst [vmem:[#allocation8 + $0x40] sm:$0xff] %v485
    %502 = vst [vmem:[#allocation8 + $0x48] sm:$0xff] %v486
    %503 = vst [vmem:[#allocation8 + $0x50] sm:$0xff] %v487
    %504 = vst [vmem:[#allocation8 + $0x58] sm:$0xff] %v488
    %505 = vst [vmem:[#allocation8 + $0x60] sm:$0xff] %v489
    %506 = vst [vmem:[#allocation8 + $0x68] sm:$0xff] %v490
    %507 = vst [vmem:[#allocation8 + $0x70] sm:$0xff] %v491
    %508 = vst [vmem:[#allocation8 + $0x78] sm:$0xff] %v492
    // Predicated region
    $region30: #{tpu_custom_call.1} parent=1 // pred_check
      _
    $region31: #{tpu_custom_call.1} parent=1 // pred_check_branch
      %510 = sbr.rel (0) target = $region33
    $region32: #{tpu_custom_call.1} parent=1 // pred_region
      %s512 = ssub.s32 2048, 2048
      %513 = vsyncadd [#allocation4], %s512
      %s514 = sshll.u32 [#allocation8], 4
      %s515 = int_to_ptr.vmem [resolvable:$true] %s514
      %520 = dma.vmem_to_hbm [thread:$0]  %s515, 2048, %s4, [#allocation4], 128, 128, 8
    $region33: #{tpu_custom_call.1} parent=1 // pred_fallthru
      _
    // Predicated region
    $region34: #{tpu_custom_call.1} parent=1 // pred_check
      _
    $region35: #{tpu_custom_call.1} parent=1 // pred_check_branch
      %522 = sbr.rel (0) target = $region37
    $region36: #{tpu_custom_call.1} parent=1 // pred_region
      %523 = dma.done [#allocation4], 2048
    $region37: #{tpu_custom_call.1} parent=1 // pred_fallthru
      _
    %524 = vsyncpa [#allocation3], 1
    %525 = vsyncpa [#allocation6], 1
    %526 = vsyncpa [#allocation4], 1

</llo_original>
